<compile_context>
chip_gen: v7x
topology: tpu7x:2x2x1
jax: 0.10.0
libtpu: 0.0.40
codegen_flags: <defaults>
</compile_context>

<pallas_src>
import functools

import jax
import jax.numpy as jnp
from jax.experimental import pallas as pl
from jax.experimental.pallas import tpu as pltpu


# ----------------------------------------------------------------------------
# Kernel 1: params = ResNet(theta)  (linearIn -> depth x residual ReLU -> linearOut)
# ----------------------------------------------------------------------------
def resnet_kernel(theta_ref, win_ref, bin_ref, wh_ref, bh_ref, wout_ref, o_ref):
    depth = wh_ref.shape[0]
    h = jnp.dot(theta_ref[...], win_ref[...], preferred_element_type=jnp.float32)
    h = jnp.maximum(h + bin_ref[...], 0.0)
    for i in range(depth):                       # static unroll, small fixed depth
        y = jnp.dot(h, wh_ref[i], preferred_element_type=jnp.float32) + bh_ref[i]
        h = h + jnp.maximum(y, 0.0)
    o_ref[...] = jnp.dot(h, wout_ref[...], preferred_element_type=jnp.float32)


def resnet_forward(theta, w_in, b_in, w_hid, b_hid, w_out, *, batch_tile=256):
    """Hyper-network.  batch_tile defaults to a multiple of 8 (MXU M dim).

    Weights use constant index maps and stay VMEM resident.
    TODO(synk): on v7x (64 MiB VMEM) with large width, stage the residual-stack
    weights once into scratch (or single-buffer the constant operands) and/or
    split the residual stack over a second 'arbitrary' grid axis.
    """
    B, d = theta.shape
    n_out = w_out.shape[1]
    tb = min(batch_tile, B)
    wbytes = 4 * (w_in.size + b_in.size + w_hid.size + b_hid.size + w_out.size)
    abytes = 4 * tb * (d + n_out)
    vmem_limit = int(min(max(2 * (wbytes + 2 * abytes), 32 * 1024 * 1024),
                         64 * 1024 * 1024))
    return pl.pallas_call(
        resnet_kernel,
        out_shape=jax.ShapeDtypeStruct((B, n_out), jnp.float32),
        grid=(pl.cdiv(B, tb),),
        in_specs=[
            pl.BlockSpec((tb, d), lambda i: (i, 0)),
            pl.BlockSpec(w_in.shape, lambda i: (0, 0)),      # constant index maps:
            pl.BlockSpec(b_in.shape, lambda i: (0, 0)),      # weights stay resident
            pl.BlockSpec(w_hid.shape, lambda i: (0, 0, 0)),
            pl.BlockSpec(b_hid.shape, lambda i: (0, 0, 0)),
            pl.BlockSpec(w_out.shape, lambda i: (0, 0)),
        ],
        out_specs=pl.BlockSpec((tb, n_out), lambda i: (i, 0)),
        compiler_params=pltpu.CompilerParams(
            dimension_semantics=("parallel",),
            vmem_limit_bytes=vmem_limit),
    )(theta, w_in, b_in, w_hid, b_hid, w_out)


# ----------------------------------------------------------------------------
# Kernel 2: stacked PDQP_Layer_X_2 iterations, TB batch elements per grid step,
# transposed lane-dense state S = X^T of shape (TB, f0, n).
# ----------------------------------------------------------------------------
def pdqp_kernel(x_ref, ve_ref, q_ref, c_ref, l_ref, u_ref, wt_ref,
                eta_ref, beta_ref, o_ref, *, num_layers):
    x_row = x_ref[...]           # (TB, 1, n)   n on the lane axis
    c_row = c_ref[...]           # (TB, 1, n)
    l_row = l_ref[...]           # (TB, 1, n)
    u_row = u_ref[...]           # (TB, 1, n)
    ve_col = ve_ref[...]         # (TB, f0, 1)

    # x.unsqueeze(-1) @ var_emb, transposed: outer product via VPU broadcast.
    s_incre = ve_col * x_row                      # (TB, f0, n)
    s = x_row + s_incre                           # X^T
    s_bar = s                                     # X_bar^T = X^T

    for li in range(num_layers):                  # static unroll over layers
        wt = wt_ref[:, li]                        # (TB, d_out, d_in) = softmax(W)^T
        eta = eta_ref[:, li]                      # (TB, 1, 1) = sigmoid(.)/(n*d_in)
        beta = beta_ref[:, li]                    # (TB, 1, 1) = sigmoid(.)
        omb = 1.0 - beta

        s_m = omb * s_bar + beta * s              # X_m^T
        # tmp = (X_m @ Wkx)^T = Wkx^T @ X_m^T                  -> (TB, d_out, n)
        tmp = jnp.einsum('bof,bfn->bon', wt, s_m,
                         preferred_element_type=jnp.float32)
        # qterm = (Q @ X_m @ Wkx)^T : contraction on the last dim of both
        # operands (MXU-friendly "NT" form; correct for any Q, no symmetry
        # assumed).  Q may be streamed in bf16; accumulation is f32.
        qterm = jnp.einsum('boj,bij->boi', tmp.astype(q_ref.dtype), q_ref[...],
                           preferred_element_type=jnp.float32)
        s_new = s - eta * (qterm + c_row)
        s_new = jnp.minimum(jnp.maximum(s_new, l_row), u_row)   # clamp(l, u)
        s_bar = omb * s_bar + beta * s_new
        s = s_new

    # x_pred = (X - x_incre).mean(-1): mean over the feature (sublane) axis,
    # stored lane-dense as a (TB, 1, n) row.
    o_ref[...] = jnp.mean(s - s_incre, axis=1, keepdims=True)


def _pick_batch_tile(bs, requested):
    """Largest divisor of bs <= requested; prefer grid length >= 2 (v7x: 2 TCs)."""
    cap = max(1, min(requested, bs if bs < 2 else bs // 2))
    for tb in range(cap, 0, -1):
        if bs % tb == 0:
            return tb
    return 1


def pdqp_layers_forward(x, var_emb, Q, c, l, u, eta_s, beta, wt, *,
                        q_dtype=jnp.float32, batch_tile=4):
    bs, n = x.shape
    L, f0 = wt.shape[1], wt.shape[3]
    tb = _pick_batch_tile(bs, batch_tile)
    grid = (bs // tb,)

    # Lane-dense operands: n sits on the last (128-lane) axis everywhere.
    x3 = x[:, None, :].astype(jnp.float32)            # (bs, 1, n)
    c3 = c[:, None, :].astype(jnp.float32)
    l3 = l[:, None, :].astype(jnp.float32)
    u3 = u[:, None, :].astype(jnp.float32)
    ve3 = var_emb[:, :, None].astype(jnp.float32)     # (bs, f0, 1)
    q_in = Q.astype(q_dtype)                          # bf16 halves Q HBM traffic

    q_itemsize = jnp.dtype(q_dtype).itemsize
    # VMEM budget: double-buffered Q block dominates.  Cap for v7x's 64 MiB.
    est = 2 * tb * n * n * q_itemsize
    est += 2 * tb * (8 * n + f0 + L * (f0 * f0 + 2)) * 4
    est += 6 * tb * f0 * max(n, 128) * 4
    vmem_limit = int(min(max(2 * est, 32 * 1024 * 1024), 64 * 1024 * 1024))
    # TODO(synk): if 2*tb*n*n*q_itemsize exceeds the v7x 64 MiB budget, add an
    # 'arbitrary' grid axis tiling Q's row dimension with a VMEM accumulator
    # (pl.when init/finalize) instead of a monolithic Q block.

    cost = pl.CostEstimate(
        flops=int(2 * bs * L * (f0 * f0 * n + f0 * n * n)),
        transcendentals=0,
        bytes_accessed=int(bs * n * n * q_itemsize
                           + bs * (6 * n + f0 + L * (f0 * f0 + 2)) * 4),
    )

    kernel = functools.partial(pdqp_kernel, num_layers=L)
    out = pl.pallas_call(
        kernel,
        out_shape=jax.ShapeDtypeStruct((bs, 1, n), jnp.float32),
        grid=grid,
        in_specs=[
            pl.BlockSpec((tb, 1, n), lambda i: (i, 0, 0)),            # x
            pl.BlockSpec((tb, f0, 1), lambda i: (i, 0, 0)),           # var_emb
            pl.BlockSpec((tb, n, n), lambda i: (i, 0, 0)),            # Q
            pl.BlockSpec((tb, 1, n), lambda i: (i, 0, 0)),            # c
            pl.BlockSpec((tb, 1, n), lambda i: (i, 0, 0)),            # l
            pl.BlockSpec((tb, 1, n), lambda i: (i, 0, 0)),            # u
            pl.BlockSpec((tb, L, f0, f0), lambda i: (i, 0, 0, 0)),    # softmax(W)^T
            pl.BlockSpec((tb, L, 1, 1), lambda i: (i, 0, 0, 0)),      # eta scaled
            pl.BlockSpec((tb, L, 1, 1), lambda i: (i, 0, 0, 0)),      # beta
        ],
        out_specs=pl.BlockSpec((tb, 1, n), lambda i: (i, 0, 0)),      # lane-dense
        compiler_params=pltpu.CompilerParams(
            dimension_semantics=("parallel",),
            vmem_limit_bytes=vmem_limit),
        cost_estimate=cost,
    )(x3, ve3, q_in, c3, l3, u3, wt.astype(jnp.float32),
      eta_s.astype(jnp.float32), beta.astype(jnp.float32))
    return out[:, 0, :]


# ----------------------------------------------------------------------------
# Full PDQP_Net_2 forward
# ----------------------------------------------------------------------------
def pdqp_net_2_forward(x, y, Q, A, c, b, l, u, theta, resnet_weights, feat_sizes,
                       *, q_dtype=jnp.float32):
    """Returns (x_pred, y_pred).  A and b are unused in the original forward."""
    del A, b
    w_in, b_in, w_hid, b_hid, w_out = resnet_weights
    # TODO(synk): for tiny theta width (d << 128) a plain XLA-fused ResNet is
    # competitive with the Pallas kernel; kept in Pallas for uniformity.
    params = resnet_forward(theta.astype(jnp.float32),
                            w_in, b_in, w_hid, b_hid, w_out)

    f0 = feat_sizes[0]
    L = len(feat_sizes) - 1
    bs, n = x.shape
    # The torch layer's broadcasting requires uniform feature sizes.
    assert all(fs == f0 for fs in feat_sizes), "uniform feat_sizes required"

    # Tiny pure-JAX glue: unflatten the hyper-network output, pre-apply the
    # sigmoids, the 1/(n*d_in) scale and the softmax(+transpose) of Wkx so the
    # serial in-kernel layer loop does no EUP/XLU work.
    var_emb = params[:, :f0]                                       # (bs, f0)
    idx = f0
    eta_list, beta_list, wt_list = [], [], []
    for li in range(L):
        d_in, d_out = feat_sizes[li], feat_sizes[li + 1]
        eta_list.append(jax.nn.sigmoid(params[:, idx]) / float(n * d_in))
        beta_list.append(jax.nn.sigmoid(params[:, idx + 1]))
        w = params[:, idx + 2: idx + 2 + d_in * d_out].reshape(bs, d_in, d_out)
        wt_list.append(jnp.swapaxes(jax.nn.softmax(w, axis=1), 1, 2))
        idx += d_in * d_out + 2
    eta_s = jnp.stack(eta_list, axis=1)[:, :, None, None]          # (bs, L, 1, 1)
    beta = jnp.stack(beta_list, axis=1)[:, :, None, None]          # (bs, L, 1, 1)
    wt = jnp.stack(wt_list, axis=1)                                # (bs, L, d_out, d_in)

    x_pred = pdqp_layers_forward(x, var_emb, Q, c, l, u, eta_s, beta, wt,
                                 q_dtype=q_dtype)
    return x_pred, y


# ----------------------------------------------------------------------------
# Pure-JAX reference (mirrors the PyTorch forward exactly)
# ----------------------------------------------------------------------------
def pdqp_net_2_ref(x, y, Q, A, c, b, l, u, theta, resnet_weights, feat_sizes):
    del A, b
    w_in, b_in, w_hid, b_hid, w_out = resnet_weights
    h = jax.nn.relu(theta @ w_in + b_in[0])
    for i in range(w_hid.shape[0]):
        h = h + jax.nn.relu(h @ w_hid[i] + b_hid[i, 0])
    params = h @ w_out

    f0 = feat_sizes[0]
    n = x.shape[1]
    var_emb = params[:, :f0][:, None, :]          # (bs, 1, f0)
    x_incre = x[:, :, None] @ var_emb             # (bs, n, f0)
    X = x[:, :, None] + x_incre
    X_bar = X
    idx = f0
    for li in range(len(feat_sizes) - 1):
        d_in, d_out = feat_sizes[li], feat_sizes[li + 1]
        eta = jax.nn.sigmoid(params[:, idx:idx + 1])[:, :, None]
        beta = jax.nn.sigmoid(params[:, idx + 1:idx + 2])[:, :, None]
        Wkx = params[:, idx + 2: idx + 2 + d_in * d_out].reshape(-1, d_in, d_out)
        Wkx = jax.nn.softmax(Wkx, axis=1)
        X_m = (1 - beta) * X_bar + beta * X
        X_new = X - eta * (Q @ X_m @ Wkx + c[:, :, None]) / (n * d_in)
        X_new = jnp.clip(X_new, l[:, :, None], u[:, :, None])
        X_bar = (1 - beta) * X_bar + beta * X_new
        X = X_new
        idx += d_in * d_out + 2
    x_pred = (X - x_incre).mean(-1)
    return x_pred, y


if __name__ == "__main__":
    bs, n, m = 2, 16, 8
    feat_sizes = [4, 4, 4]          # two PDQP layers, uniform feature width
    u_n_params = n                  # theta dim == n (docstring: theta is (bs, n))
    depth = 5
    n_params = feat_sizes[0] + sum(
        feat_sizes[i] * feat_sizes[i + 1] + 2 for i in range(len(feat_sizes) - 1))

    key = jax.random.PRNGKey(0)
    (kx, ky, kq, ka, kc, kb, kl, kt,
     kwin, kbin, kwh, kbh, kwout) = jax.random.split(key, 13)

    x = jax.random.normal(kx, (bs, n), dtype=jnp.float32)
    y = jax.random.normal(ky, (bs, m), dtype=jnp.float32)
    R = jax.random.normal(kq, (bs, n, n), dtype=jnp.float32)
    Q = jnp.einsum("bij,bkj->bik", R, R) / n          # PSD
    A = jax.random.normal(ka, (bs, m, n), dtype=jnp.float32)
    c = jax.random.normal(kc, (bs, n), dtype=jnp.float32)
    b = jax.random.normal(kb, (bs, m), dtype=jnp.float32)
    base = jax.random.normal(kl, (bs, n), dtype=jnp.float32)
    l = base - 1.0
    u = base + 1.0
    theta = jax.random.normal(kt, (bs, u_n_params), dtype=jnp.float32)

    s = 1.0 / jnp.sqrt(jnp.float32(u_n_params))
    w_in = jax.random.normal(kwin, (u_n_params, u_n_params), dtype=jnp.float32) * s
    b_in = jax.random.normal(kbin, (1, u_n_params), dtype=jnp.float32) * 0.1
    w_hid = jax.random.normal(kwh, (depth, u_n_params, u_n_params), dtype=jnp.float32) * s
    b_hid = jax.random.normal(kbh, (depth, 1, u_n_params), dtype=jnp.float32) * 0.1
    w_out = jax.random.normal(kwout, (u_n_params, n_params), dtype=jnp.float32) * s
    resnet_weights = (w_in, b_in, w_hid, b_hid, w_out)

    x_ref, y_ref = pdqp_net_2_ref(x, y, Q, A, c, b, l, u, theta,
                                  resnet_weights, feat_sizes)

    # Exact-precision path (Q streamed as f32).
    x_pred, y_pred = pdqp_net_2_forward(x, y, Q, A, c, b, l, u, theta,
                                        resnet_weights, feat_sizes,
                                        q_dtype=jnp.float32)
    x_pred = jax.block_until_ready(x_pred)
    assert x_pred.shape == (bs, n)
    assert y_pred.shape == (bs, m)
    assert jnp.allclose(x_pred, x_ref, atol=1e-4, rtol=1e-4), (x_pred, x_ref)
    assert jnp.allclose(y_pred, y_ref)

    # Bandwidth-optimized path (Q streamed as bf16, f32 accumulation).
    x_bf16, _ = pdqp_net_2_forward(x, y, Q, A, c, b, l, u, theta,
                                   resnet_weights, feat_sizes,
                                   q_dtype=jnp.bfloat16)
    x_bf16 = jax.block_until_ready(x_bf16)
    assert jnp.allclose(x_bf16, x_ref, atol=3e-2, rtol=3e-2), (x_bf16, x_ref)

    print("KERNEL_OK")
</pallas_src>

<mosaic_0001>
module attributes {stable_mosaic.version = 11 : i64} {
  func.func @resnet_kernel(%arg0: i32, %arg1: memref<2x16xf32, #tpu.memory_space<vmem>>, %arg2: memref<16x16xf32, #tpu.memory_space<vmem>>, %arg3: memref<1x16xf32, #tpu.memory_space<vmem>>, %arg4: memref<5x16x16xf32, #tpu.memory_space<vmem>>, %arg5: memref<5x1x16xf32, #tpu.memory_space<vmem>>, %arg6: memref<16x40xf32, #tpu.memory_space<vmem>>, %arg7: memref<2x40xf32, #tpu.memory_space<vmem>>) attributes {dimension_semantics = [#tpu.dimension_semantics<parallel>], iteration_bounds = array<i64: 1>, scalar_prefetch = 0 : i64, scratch_operands = 0 : i64, tpu.core_type = #tpu.core_type<tc>, window_params = [{transform_indices = @transform_0, window_bounds = array<i64: 2, 16>}, {pipeline_mode = #tpu.pipeline_mode<synchronous>, transform_indices = @transform_1, window_bounds = array<i64: 16, 16>}, {pipeline_mode = #tpu.pipeline_mode<synchronous>, transform_indices = @transform_2, window_bounds = array<i64: 1, 16>}, {pipeline_mode = #tpu.pipeline_mode<synchronous>, transform_indices = @transform_3, window_bounds = array<i64: 5, 16, 16>}, {pipeline_mode = #tpu.pipeline_mode<synchronous>, transform_indices = @transform_4, window_bounds = array<i64: 5, 1, 16>}, {pipeline_mode = #tpu.pipeline_mode<synchronous>, transform_indices = @transform_5, window_bounds = array<i64: 16, 40>}, {transform_indices = @transform_6, window_bounds = array<i64: 2, 40>}]} {
    %c0 = arith.constant 0 : index
    %c0_0 = arith.constant 0 : index
    %0 = vector.load %arg1[%c0, %c0_0] : memref<2x16xf32, #tpu.memory_space<vmem>>, vector<2x16xf32>
    %c0_1 = arith.constant 0 : index
    %c0_2 = arith.constant 0 : index
    %1 = vector.load %arg2[%c0_1, %c0_2] : memref<16x16xf32, #tpu.memory_space<vmem>>, vector<16x16xf32>
    %cst = arith.constant dense<0.000000e+00> : vector<2x16xf32>
    %2 = tpu.matmul %0, %1, %cst {dimension_numbers = #tpu.dot_dimension_numbers<[1], [0], [0], [1], [0, 0, 1, 1], [], []>} : vector<2x16xf32>, vector<16x16xf32>, vector<2x16xf32> -> vector<2x16xf32>
    %c0_3 = arith.constant 0 : index
    %c0_4 = arith.constant 0 : index
    %3 = vector.load %arg3[%c0_3, %c0_4] : memref<1x16xf32, #tpu.memory_space<vmem>>, vector<1x16xf32>
    %4 = vector.broadcast %3 : vector<1x16xf32> to vector<2x16xf32>
    %5 = arith.addf %2, %4 : vector<2x16xf32>
    %cst_5 = arith.constant 0.000000e+00 : f32
    %6 = vector.broadcast %cst_5 : f32 to vector<2x16xf32>
    %7 = arith.maximumf %5, %6 : vector<2x16xf32>
    %c0_6 = arith.constant 0 : index
    %c0_7 = arith.constant 0 : index
    %c0_8 = arith.constant 0 : index
    %8 = vector.load %arg4[%c0_6, %c0_7, %c0_8] : memref<5x16x16xf32, #tpu.memory_space<vmem>>, vector<1x16x16xf32>
    %9 = vector.shape_cast %8 : vector<1x16x16xf32> to vector<16x16xf32>
    %cst_9 = arith.constant dense<0.000000e+00> : vector<2x16xf32>
    %10 = tpu.matmul %7, %9, %cst_9 {dimension_numbers = #tpu.dot_dimension_numbers<[1], [0], [0], [1], [0, 0, 1, 1], [], []>} : vector<2x16xf32>, vector<16x16xf32>, vector<2x16xf32> -> vector<2x16xf32>
    %c0_10 = arith.constant 0 : index
    %c0_11 = arith.constant 0 : index
    %c0_12 = arith.constant 0 : index
    %11 = vector.load %arg5[%c0_10, %c0_11, %c0_12] : memref<5x1x16xf32, #tpu.memory_space<vmem>>, vector<1x1x16xf32>
    %12 = vector.shape_cast %11 : vector<1x1x16xf32> to vector<1x16xf32>
    %13 = vector.broadcast %12 : vector<1x16xf32> to vector<2x16xf32>
    %14 = arith.addf %10, %13 : vector<2x16xf32>
    %cst_13 = arith.constant 0.000000e+00 : f32
    %15 = vector.broadcast %cst_13 : f32 to vector<2x16xf32>
    %16 = arith.maximumf %14, %15 : vector<2x16xf32>
    %17 = arith.addf %7, %16 : vector<2x16xf32>
    %c1 = arith.constant 1 : index
    %c0_14 = arith.constant 0 : index
    %c0_15 = arith.constant 0 : index
    %18 = vector.load %arg4[%c1, %c0_14, %c0_15] : memref<5x16x16xf32, #tpu.memory_space<vmem>>, vector<1x16x16xf32>
    %19 = vector.shape_cast %18 : vector<1x16x16xf32> to vector<16x16xf32>
    %cst_16 = arith.constant dense<0.000000e+00> : vector<2x16xf32>
    %20 = tpu.matmul %17, %19, %cst_16 {dimension_numbers = #tpu.dot_dimension_numbers<[1], [0], [0], [1], [0, 0, 1, 1], [], []>} : vector<2x16xf32>, vector<16x16xf32>, vector<2x16xf32> -> vector<2x16xf32>
    %c1_17 = arith.constant 1 : index
    %c0_18 = arith.constant 0 : index
    %c0_19 = arith.constant 0 : index
    %21 = vector.load %arg5[%c1_17, %c0_18, %c0_19] : memref<5x1x16xf32, #tpu.memory_space<vmem>>, vector<1x1x16xf32>
    %22 = vector.shape_cast %21 : vector<1x1x16xf32> to vector<1x16xf32>
    %23 = vector.broadcast %22 : vector<1x16xf32> to vector<2x16xf32>
    %24 = arith.addf %20, %23 : vector<2x16xf32>
    %cst_20 = arith.constant 0.000000e+00 : f32
    %25 = vector.broadcast %cst_20 : f32 to vector<2x16xf32>
    %26 = arith.maximumf %24, %25 : vector<2x16xf32>
    %27 = arith.addf %17, %26 : vector<2x16xf32>
    %c2 = arith.constant 2 : index
    %c0_21 = arith.constant 0 : index
    %c0_22 = arith.constant 0 : index
    %28 = vector.load %arg4[%c2, %c0_21, %c0_22] : memref<5x16x16xf32, #tpu.memory_space<vmem>>, vector<1x16x16xf32>
    %29 = vector.shape_cast %28 : vector<1x16x16xf32> to vector<16x16xf32>
    %cst_23 = arith.constant dense<0.000000e+00> : vector<2x16xf32>
    %30 = tpu.matmul %27, %29, %cst_23 {dimension_numbers = #tpu.dot_dimension_numbers<[1], [0], [0], [1], [0, 0, 1, 1], [], []>} : vector<2x16xf32>, vector<16x16xf32>, vector<2x16xf32> -> vector<2x16xf32>
    %c2_24 = arith.constant 2 : index
    %c0_25 = arith.constant 0 : index
    %c0_26 = arith.constant 0 : index
    %31 = vector.load %arg5[%c2_24, %c0_25, %c0_26] : memref<5x1x16xf32, #tpu.memory_space<vmem>>, vector<1x1x16xf32>
    %32 = vector.shape_cast %31 : vector<1x1x16xf32> to vector<1x16xf32>
    %33 = vector.broadcast %32 : vector<1x16xf32> to vector<2x16xf32>
    %34 = arith.addf %30, %33 : vector<2x16xf32>
    %cst_27 = arith.constant 0.000000e+00 : f32
    %35 = vector.broadcast %cst_27 : f32 to vector<2x16xf32>
    %36 = arith.maximumf %34, %35 : vector<2x16xf32>
    %37 = arith.addf %27, %36 : vector<2x16xf32>
    %c3 = arith.constant 3 : index
    %c0_28 = arith.constant 0 : index
    %c0_29 = arith.constant 0 : index
    %38 = vector.load %arg4[%c3, %c0_28, %c0_29] : memref<5x16x16xf32, #tpu.memory_space<vmem>>, vector<1x16x16xf32>
    %39 = vector.shape_cast %38 : vector<1x16x16xf32> to vector<16x16xf32>
    %cst_30 = arith.constant dense<0.000000e+00> : vector<2x16xf32>
    %40 = tpu.matmul %37, %39, %cst_30 {dimension_numbers = #tpu.dot_dimension_numbers<[1], [0], [0], [1], [0, 0, 1, 1], [], []>} : vector<2x16xf32>, vector<16x16xf32>, vector<2x16xf32> -> vector<2x16xf32>
    %c3_31 = arith.constant 3 : index
    %c0_32 = arith.constant 0 : index
    %c0_33 = arith.constant 0 : index
    %41 = vector.load %arg5[%c3_31, %c0_32, %c0_33] : memref<5x1x16xf32, #tpu.memory_space<vmem>>, vector<1x1x16xf32>
    %42 = vector.shape_cast %41 : vector<1x1x16xf32> to vector<1x16xf32>
    %43 = vector.broadcast %42 : vector<1x16xf32> to vector<2x16xf32>
    %44 = arith.addf %40, %43 : vector<2x16xf32>
    %cst_34 = arith.constant 0.000000e+00 : f32
    %45 = vector.broadcast %cst_34 : f32 to vector<2x16xf32>
    %46 = arith.maximumf %44, %45 : vector<2x16xf32>
    %47 = arith.addf %37, %46 : vector<2x16xf32>
    %c4 = arith.constant 4 : index
    %c0_35 = arith.constant 0 : index
    %c0_36 = arith.constant 0 : index
    %48 = vector.load %arg4[%c4, %c0_35, %c0_36] : memref<5x16x16xf32, #tpu.memory_space<vmem>>, vector<1x16x16xf32>
    %49 = vector.shape_cast %48 : vector<1x16x16xf32> to vector<16x16xf32>
    %cst_37 = arith.constant dense<0.000000e+00> : vector<2x16xf32>
    %50 = tpu.matmul %47, %49, %cst_37 {dimension_numbers = #tpu.dot_dimension_numbers<[1], [0], [0], [1], [0, 0, 1, 1], [], []>} : vector<2x16xf32>, vector<16x16xf32>, vector<2x16xf32> -> vector<2x16xf32>
    %c4_38 = arith.constant 4 : index
    %c0_39 = arith.constant 0 : index
    %c0_40 = arith.constant 0 : index
    %51 = vector.load %arg5[%c4_38, %c0_39, %c0_40] : memref<5x1x16xf32, #tpu.memory_space<vmem>>, vector<1x1x16xf32>
    %52 = vector.shape_cast %51 : vector<1x1x16xf32> to vector<1x16xf32>
    %53 = vector.broadcast %52 : vector<1x16xf32> to vector<2x16xf32>
    %54 = arith.addf %50, %53 : vector<2x16xf32>
    %cst_41 = arith.constant 0.000000e+00 : f32
    %55 = vector.broadcast %cst_41 : f32 to vector<2x16xf32>
    %56 = arith.maximumf %54, %55 : vector<2x16xf32>
    %57 = arith.addf %47, %56 : vector<2x16xf32>
    %c0_42 = arith.constant 0 : index
    %c0_43 = arith.constant 0 : index
    %58 = vector.load %arg6[%c0_42, %c0_43] : memref<16x40xf32, #tpu.memory_space<vmem>>, vector<16x40xf32>
    %cst_44 = arith.constant dense<0.000000e+00> : vector<2x40xf32>
    %59 = tpu.matmul %57, %58, %cst_44 {dimension_numbers = #tpu.dot_dimension_numbers<[1], [0], [0], [1], [0, 0, 1, 1], [], []>} : vector<2x16xf32>, vector<16x40xf32>, vector<2x40xf32> -> vector<2x40xf32>
    %c0_45 = arith.constant 0 : index
    %c0_46 = arith.constant 0 : index
    %60 = vector.load %arg7[%c0_45, %c0_46] : memref<2x40xf32, #tpu.memory_space<vmem>>, vector<2x40xf32>
    tpu.vector_store %arg7[%c0_45, %c0_46], %59 {strides = array<i32>} : memref<2x40xf32, #tpu.memory_space<vmem>>, vector<2x40xf32>,
    return
  }
  func.func @transform_0(%arg0: i32) -> (i32, i32) {
    %c0_i32 = arith.constant 0 : i32
    %c0_i32_0 = arith.constant 0 : i32
    return %arg0, %c0_i32 : i32, i32
  }
  func.func @transform_1(%arg0: i32) -> (i32, i32) {
    %c0_i32 = arith.constant 0 : i32
    %c0_i32_0 = arith.constant 0 : i32
    %c0_i32_1 = arith.constant 0 : i32
    return %c0_i32, %c0_i32_0 : i32, i32
  }
  func.func @transform_2(%arg0: i32) -> (i32, i32) {
    %c0_i32 = arith.constant 0 : i32
    %c0_i32_0 = arith.constant 0 : i32
    %c0_i32_1 = arith.constant 0 : i32
    return %c0_i32, %c0_i32_0 : i32, i32
  }
  func.func @transform_3(%arg0: i32) -> (i32, i32, i32) {
    %c0_i32 = arith.constant 0 : i32
    %c0_i32_0 = arith.constant 0 : i32
    %c0_i32_1 = arith.constant 0 : i32
    %c0_i32_2 = arith.constant 0 : i32
    return %c0_i32, %c0_i32_0, %c0_i32_1 : i32, i32, i32
  }
  func.func @transform_4(%arg0: i32) -> (i32, i32, i32) {
    %c0_i32 = arith.constant 0 : i32
    %c0_i32_0 = arith.constant 0 : i32
    %c0_i32_1 = arith.constant 0 : i32
    %c0_i32_2 = arith.constant 0 : i32
    return %c0_i32, %c0_i32_0, %c0_i32_1 : i32, i32, i32
  }
  func.func @transform_5(%arg0: i32) -> (i32, i32) {
    %c0_i32 = arith.constant 0 : i32
    %c0_i32_0 = arith.constant 0 : i32
    %c0_i32_1 = arith.constant 0 : i32
    return %c0_i32, %c0_i32_0 : i32, i32
  }
  func.func @transform_6(%arg0: i32) -> (i32, i32) {
    %c0_i32 = arith.constant 0 : i32
    %c0_i32_0 = arith.constant 0 : i32
    return %arg0, %c0_i32 : i32, i32
  }
}

</mosaic_0001>

<llo_original>
// kernel: tpu_custom_call.1
$region0: #{tpu_custom_call.1}
  #allocation0 [shape = 'u32[]', space=smem, size = 0x4, offset = 0x4, fixed_abs, tag = 'smem constant byte address 0x4 - core index']
  #allocation1 [shape = 'u32[144,128]{1,0:T(1,128)}', space=vmem, size = 0x12000, scoped, tag = 'internal scratch']
  %s0 = inlined_call_operand.hbm [shape: f32[2,16], index: 0, kind: input, shape index: {}]
  %s1 = inlined_call_operand.hbm [shape: f32[16,16], index: 1, kind: input, shape index: {}]
  %s2 = inlined_call_operand.vmem [shape: f32[1,16], index: 2, kind: input, shape index: {}]
  %s3 = inlined_call_operand.hbm [shape: f32[5,16,16], index: 3, kind: input, shape index: {}]
  %s4 = inlined_call_operand.hbm [shape: f32[5,1,16], index: 4, kind: input, shape index: {}]
  %s5 = inlined_call_operand.vmem [shape: f32[16,40], index: 5, kind: input, shape index: {}]
  %s6 = inlined_call_operand.hbm [shape: f32[2,40], index: 6, kind: output, shape index: {}]
  %s7 = sld [smem:[#allocation0]]
  $region50: #{tpu_custom_call.1} parent=0
    _
  %s9 = ssub.s32 1, %s7
  %s10 = scalar_select 0, %s9, %s7
  $region1: #{tpu_custom_call.1} parent=0
    #allocation2 [shape = 'u8[1024]{0}', space=vmem, size = 0x400, scoped, tag = 'input window, operand 0, single buffered']
    #allocation3 [shape = 's32[1]{0}', space=sflag, size = 0x4, scoped, tag = 'scoped memory for tpu_custom_call.1']
    #allocation4 [shape = 's32[1]{0}', space=sflag, size = 0x4, scoped, tag = 'scoped memory for tpu_custom_call.1']
    #allocation5 [shape = 'u8[8192]{0}', space=vmem, size = 0x2000, scoped, tag = 'input window, operand 1, single buffered']
    #allocation6 [shape = 's32[1]{0}', space=sflag, size = 0x4, scoped, tag = 'scoped memory for tpu_custom_call.1']
    #allocation7 [shape = 'u8[40960]{0}', space=vmem, size = 0xa000, scoped, tag = 'input window, operand 3, single buffered']
    #allocation8 [shape = 'u8[2560]{0}', space=vmem, size = 0xc00, scoped, tag = 'input window, operand 4, single buffered']
    #allocation9 [shape = 's32[1]{0}', space=sflag, size = 0x4, scoped, tag = 'scoped memory for tpu_custom_call.1']
    #allocation10 [shape = 'u8[1024]{0}', space=vmem, size = 0x400, scoped, tag = 'output window, operand 0, single buffered']
    %11 = vsyncpa [#allocation3], 0
    %12 = vsyncpa [#allocation6], 0
    %13 = vsyncpa [#allocation9], 0
    %14 = vsyncpa [#allocation4], 0
    // Predicated region
    $region2: #{tpu_custom_call.1} parent=1 // pred_check
      _
    $region3: #{tpu_custom_call.1} parent=1 // pred_check_branch
      %16 = sbr.rel (0) target = $region5
    $region4: #{tpu_custom_call.1} parent=1 // pred_region
      %s18 = ssub.s32 32, 32
      %19 = vsyncadd [#allocation3], %s18
      %s21 = sshll.u32 [#allocation2], 4
      %s22 = int_to_ptr.vmem [resolvable:$true] %s21
      %24 = dma.hbm_to_vmem [thread:$0]  %s0, 32, %s22, [#allocation3]
    $region5: #{tpu_custom_call.1} parent=1 // pred_fallthru
      _
    // Predicated region
    $region6: #{tpu_custom_call.1} parent=1 // pred_check
      _
    $region7: #{tpu_custom_call.1} parent=1 // pred_check_branch
      %26 = sbr.rel (0) target = $region9
    $region8: #{tpu_custom_call.1} parent=1 // pred_region
      %s28 = ssub.s32 256, 256
      %29 = vsyncadd [#allocation6], %s28
      %s30 = sshll.u32 [#allocation5], 4
      %s31 = int_to_ptr.vmem [resolvable:$true] %s30
      %36 = dma.hbm_to_vmem [thread:$0]  %s1, 256, %s31, [#allocation6], 128, 128, 8
    $region9: #{tpu_custom_call.1} parent=1 // pred_fallthru
      _
    // Predicated region
    $region10: #{tpu_custom_call.1} parent=1 // pred_check
      _
    $region11: #{tpu_custom_call.1} parent=1 // pred_check_branch
      %38 = sbr.rel (0) target = $region13
    $region12: #{tpu_custom_call.1} parent=1 // pred_region
      _
    $region13: #{tpu_custom_call.1} parent=1 // pred_fallthru
      _
    // Predicated region
    $region14: #{tpu_custom_call.1} parent=1 // pred_check
      _
    $region15: #{tpu_custom_call.1} parent=1 // pred_check_branch
      %40 = sbr.rel (0) target = $region17
    $region16: #{tpu_custom_call.1} parent=1 // pred_region
      %s42 = ssub.s32 1280, 1280
      %43 = vsyncadd [#allocation6], %s42
      %s44 = sshll.u32 [#allocation7], 4
      %s45 = int_to_ptr.vmem [resolvable:$true] %s44
      %50 = dma.hbm_to_vmem [thread:$0]  %s3, 1280, %s45, [#allocation6], 128, 128, 8
    $region17: #{tpu_custom_call.1} parent=1 // pred_fallthru
      _
    // Predicated region
    $region18: #{tpu_custom_call.1} parent=1 // pred_check
      _
    $region19: #{tpu_custom_call.1} parent=1 // pred_check_branch
      %52 = sbr.rel (0) target = $region21
    $region20: #{tpu_custom_call.1} parent=1 // pred_region
      %s54 = ssub.s32 80, 80
      %55 = vsyncadd [#allocation9], %s54
      %s56 = sshll.u32 [#allocation8], 4
      %s57 = int_to_ptr.vmem [resolvable:$true] %s56
      %62 = dma.hbm_to_vmem [thread:$0]  %s4, 80, %s57, [#allocation9], 16, 16, 1
    $region21: #{tpu_custom_call.1} parent=1 // pred_fallthru
      _
    // Predicated region
    $region22: #{tpu_custom_call.1} parent=1 // pred_check
      _
    $region23: #{tpu_custom_call.1} parent=1 // pred_check_branch
      %64 = sbr.rel (0) target = $region25
    $region24: #{tpu_custom_call.1} parent=1 // pred_region
      _
    $region25: #{tpu_custom_call.1} parent=1 // pred_fallthru
      _
    // Predicated region
    $region26: #{tpu_custom_call.1} parent=1 // pred_check
      _
    $region27: #{tpu_custom_call.1} parent=1 // pred_check_branch
      %66 = sbr.rel (0) target = $region29
    $region28: #{tpu_custom_call.1} parent=1 // pred_region
      %67 = dma.done [#allocation3], 32
    $region29: #{tpu_custom_call.1} parent=1 // pred_fallthru
      _
    // Predicated region
    $region30: #{tpu_custom_call.1} parent=1 // pred_check
      _
    $region31: #{tpu_custom_call.1} parent=1 // pred_check_branch
      %69 = sbr.rel (0) target = $region33
    $region32: #{tpu_custom_call.1} parent=1 // pred_region
      %70 = dma.done [#allocation6], 256
    $region33: #{tpu_custom_call.1} parent=1 // pred_fallthru
      _
    // Predicated region
    $region34: #{tpu_custom_call.1} parent=1 // pred_check
      _
    $region35: #{tpu_custom_call.1} parent=1 // pred_check_branch
      %72 = sbr.rel (0) target = $region37
    $region36: #{tpu_custom_call.1} parent=1 // pred_region
      %73 = dma.done [#allocation6], 1280
    $region37: #{tpu_custom_call.1} parent=1 // pred_fallthru
      _
    // Predicated region
    $region38: #{tpu_custom_call.1} parent=1 // pred_check
      _
    $region39: #{tpu_custom_call.1} parent=1 // pred_check_branch
      %75 = sbr.rel (0) target = $region41
    $region40: #{tpu_custom_call.1} parent=1 // pred_region
      %76 = dma.done [#allocation9], 80
    $region41: #{tpu_custom_call.1} parent=1 // pred_fallthru
      _
    %v77 = vld [vmem:[#allocation2] sm:$0x3]
    %v78 = vld [vmem:[#allocation5] sm:$0xff]
    %v79 = vld [vmem:[#allocation5 + $0x8] sm:$0xff]
    %v80 = vld [vmem:[%s2] sm:$0x1]
    %v82 = vlaneseq
    %v83 = vshrl.u32 %v82, 7
    %v84 = vsub.s32 0, %v83
    %v85 = vrot.slane %v80, %v84
    %vm87 = vcmask 130048
    %v89 = vsel %vm87, %v77, 0
    %91 = vmatprep.subr.mxu0 0.0
    %92 = vmatpush1.msra.mxu0 %v78
    %93 = vmatprep.subr.mxu0 0.0
    %94 = vmatpush1.msra.mxu0 %v79
    %95 = vmatprep.subr.mxu0 0.0
    %96 = vmatpush1.msra.mxu0 0.0
    %97 = vmatprep.subr.mxu0 0.0
    %98 = vmatpush1.msra.mxu0 0.0
    %99 = vmatprep.subr.mxu0 0.0
    %100 = vmatpush1.msra.mxu0 0.0
    %101 = vmatprep.subr.mxu0 0.0
    %102 = vmatpush1.msra.mxu0 0.0
    %103 = vmatprep.subr.mxu0 0.0
    %104 = vmatpush1.msra.mxu0 0.0
    %105 = vmatprep.subr.mxu0 0.0
    %106 = vmatpush1.msra.mxu0 0.0
    %107 = vmatprep.subr.mxu0 0.0
    %108 = vmatpush1.msra.mxu0 0.0
    %109 = vmatprep.subr.mxu0 0.0
    %110 = vmatpush1.msra.mxu0 0.0
    %111 = vmatprep.subr.mxu0 0.0
    %112 = vmatpush1.msra.mxu0 0.0
    %113 = vmatprep.subr.mxu0 0.0
    %114 = vmatpush1.msra.mxu0 0.0
    %115 = vmatprep.subr.mxu0 0.0
    %116 = vmatpush1.msra.mxu0 0.0
    %117 = vmatprep.subr.mxu0 0.0
    %118 = vmatpush1.msra.mxu0 0.0
    %119 = vmatprep.subr.mxu0 0.0
    %120 = vmatpush1.msra.mxu0 0.0
    %121 = vmatprep.subr.mxu0 0.0
    %122 = vmatpush1.msra.mxu0 0.0
    %123 = vmatprep.subr.mxu0 0.0
    %124 = vmatpush1.msra.mxu0 0.0
    %125 = vmatprep.subr.mxu0 0.0
    %126 = vmatpush1.msra.mxu0 0.0
    %127 = vmatprep.subr.mxu0 0.0
    %128 = vmatpush1.msra.mxu0 0.0
    %129 = vmatprep.subr.mxu0 0.0
    %130 = vmatpush1.msra.mxu0 0.0
    %131 = vmatprep.subr.mxu0 0.0
    %132 = vmatpush1.msra.mxu0 0.0
    %133 = vmatprep.subr.mxu0 0.0
    %134 = vmatpush1.msra.mxu0 0.0
    %135 = vmatprep.subr.mxu0 0.0
    %136 = vmatpush1.msra.mxu0 0.0
    %137 = vmatprep.subr.mxu0 0.0
    %138 = vmatpush1.msra.mxu0 0.0
    %139 = vmatprep.subr.mxu0 0.0
    %140 = vmatpush1.msra.mxu0 0.0
    %141 = vmatprep.subr.mxu0 0.0
    %142 = vmatpush1.msra.mxu0 0.0
    %143 = vmatprep.subr.mxu0 0.0
    %144 = vmatpush1.msra.mxu0 0.0
    %145 = vmatprep.subr.mxu0 0.0
    %146 = vmatpush1.msra.mxu0 0.0
    %147 = vmatprep.subr.mxu0 0.0
    %148 = vmatpush1.msra.mxu0 0.0
    %149 = vmatprep.subr.mxu0 0.0
    %150 = vmatpush1.msra.mxu0 0.0
    %151 = vmatprep.subr.mxu0 0.0
    %152 = vmatpush1.msra.mxu0 0.0
    %153 = vmatprep.subr.mxu0 0.0
    %154 = vmatpush1.msra.mxu0 0.0
    %155 = vmatprep.mubr.f32.mxu0 0.0
    %156 = vmatmul.mubr.f32.gmra.mrb[0].mxu0 %v89
    %v157 = vpop.f32.mrb[0].mxu0
    %v158 = vadd.f32 %v85, %v157
    %v159 = vpop.f32.mrb[0].mxu0
    %160 = vdwg.mxu0
    %v161 = vmax.f32 %v158, 0.0
    %v162 = vld [vmem:[#allocation7] sm:$0xff]
    %v163 = vld [vmem:[#allocation7 + $0x8] sm:$0xff]
    %v164 = vld [vmem:[#allocation8] sm:$0x1]
    %v166 = vlaneseq
    %v167 = vshrl.u32 %v166, 7
    %v168 = vsub.s32 0, %v167
    %v169 = vrot.slane %v164, %v168
    %v172 = vsel %vm87, %v161, 0
    %174 = vmatprep.subr.mxu0 0.0
    %175 = vmatpush1.msra.mxu0 %v162
    %176 = vmatprep.subr.mxu0 0.0
    %177 = vmatpush1.msra.mxu0 %v163
    %178 = vmatprep.subr.mxu0 0.0
    %179 = vmatpush1.msra.mxu0 0.0
    %180 = vmatprep.subr.mxu0 0.0
    %181 = vmatpush1.msra.mxu0 0.0
    %182 = vmatprep.subr.mxu0 0.0
    %183 = vmatpush1.msra.mxu0 0.0
    %184 = vmatprep.subr.mxu0 0.0
    %185 = vmatpush1.msra.mxu0 0.0
    %186 = vmatprep.subr.mxu0 0.0
    %187 = vmatpush1.msra.mxu0 0.0
    %188 = vmatprep.subr.mxu0 0.0
    %189 = vmatpush1.msra.mxu0 0.0
    %190 = vmatprep.subr.mxu0 0.0
    %191 = vmatpush1.msra.mxu0 0.0
    %192 = vmatprep.subr.mxu0 0.0
    %193 = vmatpush1.msra.mxu0 0.0
    %194 = vmatprep.subr.mxu0 0.0
    %195 = vmatpush1.msra.mxu0 0.0
    %196 = vmatprep.subr.mxu0 0.0
    %197 = vmatpush1.msra.mxu0 0.0
    %198 = vmatprep.subr.mxu0 0.0
    %199 = vmatpush1.msra.mxu0 0.0
    %200 = vmatprep.subr.mxu0 0.0
    %201 = vmatpush1.msra.mxu0 0.0
    %202 = vmatprep.subr.mxu0 0.0
    %203 = vmatpush1.msra.mxu0 0.0
    %204 = vmatprep.subr.mxu0 0.0
    %205 = vmatpush1.msra.mxu0 0.0
    %206 = vmatprep.subr.mxu0 0.0
    %207 = vmatpush1.msra.mxu0 0.0
    %208 = vmatprep.subr.mxu0 0.0
    %209 = vmatpush1.msra.mxu0 0.0
    %210 = vmatprep.subr.mxu0 0.0
    %211 = vmatpush1.msra.mxu0 0.0
    %212 = vmatprep.subr.mxu0 0.0
    %213 = vmatpush1.msra.mxu0 0.0
    %214 = vmatprep.subr.mxu0 0.0
    %215 = vmatpush1.msra.mxu0 0.0
    %216 = vmatprep.subr.mxu0 0.0
    %217 = vmatpush1.msra.mxu0 0.0
    %218 = vmatprep.subr.mxu0 0.0
    %219 = vmatpush1.msra.mxu0 0.0
    %220 = vmatprep.subr.mxu0 0.0
    %221 = vmatpush1.msra.mxu0 0.0
    %222 = vmatprep.subr.mxu0 0.0
    %223 = vmatpush1.msra.mxu0 0.0
    %224 = vmatprep.subr.mxu0 0.0
    %225 = vmatpush1.msra.mxu0 0.0
    %226 = vmatprep.subr.mxu0 0.0
    %227 = vmatpush1.msra.mxu0 0.0
    %228 = vmatprep.subr.mxu0 0.0
    %229 = vmatpush1.msra.mxu0 0.0
    %230 = vmatprep.subr.mxu0 0.0
    %231 = vmatpush1.msra.mxu0 0.0
    %232 = vmatprep.subr.mxu0 0.0
    %233 = vmatpush1.msra.mxu0 0.0
    %234 = vmatprep.subr.mxu0 0.0
    %235 = vmatpush1.msra.mxu0 0.0
    %236 = vmatprep.subr.mxu0 0.0
    %237 = vmatpush1.msra.mxu0 0.0
    %238 = vmatprep.mubr.f32.mxu0 0.0
    %239 = vmatmul.mubr.f32.gmra.mrb[0].mxu0 %v172
    %v240 = vpop.f32.mrb[0].mxu0
    %v241 = vadd.f32 %v169, %v240
    %v242 = vpop.f32.mrb[0].mxu0
    %243 = vdwg.mxu0
    %v244 = vmax.f32 %v241, 0.0
    %v245 = vadd.f32 %v161, %v244
    %s246 = scalar_lea.vmem [#allocation7], 16
    %v247 = vld [vmem:[%s246] sm:$0xff]
    %v248 = vld [vmem:[%s246 + $0x8] sm:$0xff]
    %s249 = scalar_lea.vmem [#allocation8], 1
    %v250 = vld [vmem:[%s249] sm:$0x1]
    %v252 = vlaneseq
    %v253 = vshrl.u32 %v252, 7
    %v254 = vsub.s32 0, %v253
    %v255 = vrot.slane %v250, %v254
    %v258 = vsel %vm87, %v245, 0
    %260 = vmatprep.subr.mxu0 0.0
    %261 = vmatpush1.msra.mxu0 %v247
    %262 = vmatprep.subr.mxu0 0.0
    %263 = vmatpush1.msra.mxu0 %v248
    %264 = vmatprep.subr.mxu0 0.0
    %265 = vmatpush1.msra.mxu0 0.0
    %266 = vmatprep.subr.mxu0 0.0
    %267 = vmatpush1.msra.mxu0 0.0
    %268 = vmatprep.subr.mxu0 0.0
    %269 = vmatpush1.msra.mxu0 0.0
    %270 = vmatprep.subr.mxu0 0.0
    %271 = vmatpush1.msra.mxu0 0.0
    %272 = vmatprep.subr.mxu0 0.0
    %273 = vmatpush1.msra.mxu0 0.0
    %274 = vmatprep.subr.mxu0 0.0
    %275 = vmatpush1.msra.mxu0 0.0
    %276 = vmatprep.subr.mxu0 0.0
    %277 = vmatpush1.msra.mxu0 0.0
    %278 = vmatprep.subr.mxu0 0.0
    %279 = vmatpush1.msra.mxu0 0.0
    %280 = vmatprep.subr.mxu0 0.0
    %281 = vmatpush1.msra.mxu0 0.0
    %282 = vmatprep.subr.mxu0 0.0
    %283 = vmatpush1.msra.mxu0 0.0
    %284 = vmatprep.subr.mxu0 0.0
    %285 = vmatpush1.msra.mxu0 0.0
    %286 = vmatprep.subr.mxu0 0.0
    %287 = vmatpush1.msra.mxu0 0.0
    %288 = vmatprep.subr.mxu0 0.0
    %289 = vmatpush1.msra.mxu0 0.0
    %290 = vmatprep.subr.mxu0 0.0
    %291 = vmatpush1.msra.mxu0 0.0
    %292 = vmatprep.subr.mxu0 0.0
    %293 = vmatpush1.msra.mxu0 0.0
    %294 = vmatprep.subr.mxu0 0.0
    %295 = vmatpush1.msra.mxu0 0.0
    %296 = vmatprep.subr.mxu0 0.0
    %297 = vmatpush1.msra.mxu0 0.0
    %298 = vmatprep.subr.mxu0 0.0
    %299 = vmatpush1.msra.mxu0 0.0
    %300 = vmatprep.subr.mxu0 0.0
    %301 = vmatpush1.msra.mxu0 0.0
    %302 = vmatprep.subr.mxu0 0.0
    %303 = vmatpush1.msra.mxu0 0.0
    %304 = vmatprep.subr.mxu0 0.0
    %305 = vmatpush1.msra.mxu0 0.0
    %306 = vmatprep.subr.mxu0 0.0
    %307 = vmatpush1.msra.mxu0 0.0
    %308 = vmatprep.subr.mxu0 0.0
    %309 = vmatpush1.msra.mxu0 0.0
    %310 = vmatprep.subr.mxu0 0.0
    %311 = vmatpush1.msra.mxu0 0.0
    %312 = vmatprep.subr.mxu0 0.0
    %313 = vmatpush1.msra.mxu0 0.0
    %314 = vmatprep.subr.mxu0 0.0
    %315 = vmatpush1.msra.mxu0 0.0
    %316 = vmatprep.subr.mxu0 0.0
    %317 = vmatpush1.msra.mxu0 0.0
    %318 = vmatprep.subr.mxu0 0.0
    %319 = vmatpush1.msra.mxu0 0.0
    %320 = vmatprep.subr.mxu0 0.0
    %321 = vmatpush1.msra.mxu0 0.0
    %322 = vmatprep.subr.mxu0 0.0
    %323 = vmatpush1.msra.mxu0 0.0
    %324 = vmatprep.mubr.f32.mxu0 0.0
    %325 = vmatmul.mubr.f32.gmra.mrb[0].mxu0 %v258
    %v326 = vpop.f32.mrb[0].mxu0
    %v327 = vadd.f32 %v255, %v326
    %v328 = vpop.f32.mrb[0].mxu0
    %329 = vdwg.mxu0
    %v330 = vmax.f32 %v327, 0.0
    %v331 = vadd.f32 %v245, %v330
    %s332 = scalar_lea.vmem [#allocation7], 32
    %v333 = vld [vmem:[%s332] sm:$0xff]
    %v334 = vld [vmem:[%s332 + $0x8] sm:$0xff]
    %s335 = scalar_lea.vmem [#allocation8], 2
    %v336 = vld [vmem:[%s335] sm:$0x1]
    %v338 = vlaneseq
    %v339 = vshrl.u32 %v338, 7
    %v340 = vsub.s32 0, %v339
    %v341 = vrot.slane %v336, %v340
    %v344 = vsel %vm87, %v331, 0
    %346 = vmatprep.subr.mxu0 0.0
    %347 = vmatpush1.msra.mxu0 %v333
    %348 = vmatprep.subr.mxu0 0.0
    %349 = vmatpush1.msra.mxu0 %v334
    %350 = vmatprep.subr.mxu0 0.0
    %351 = vmatpush1.msra.mxu0 0.0
    %352 = vmatprep.subr.mxu0 0.0
    %353 = vmatpush1.msra.mxu0 0.0
    %354 = vmatprep.subr.mxu0 0.0
    %355 = vmatpush1.msra.mxu0 0.0
    %356 = vmatprep.subr.mxu0 0.0
    %357 = vmatpush1.msra.mxu0 0.0
    %358 = vmatprep.subr.mxu0 0.0
    %359 = vmatpush1.msra.mxu0 0.0
    %360 = vmatprep.subr.mxu0 0.0
    %361 = vmatpush1.msra.mxu0 0.0
    %362 = vmatprep.subr.mxu0 0.0
    %363 = vmatpush1.msra.mxu0 0.0
    %364 = vmatprep.subr.mxu0 0.0
    %365 = vmatpush1.msra.mxu0 0.0
    %366 = vmatprep.subr.mxu0 0.0
    %367 = vmatpush1.msra.mxu0 0.0
    %368 = vmatprep.subr.mxu0 0.0
    %369 = vmatpush1.msra.mxu0 0.0
    %370 = vmatprep.subr.mxu0 0.0
    %371 = vmatpush1.msra.mxu0 0.0
    %372 = vmatprep.subr.mxu0 0.0
    %373 = vmatpush1.msra.mxu0 0.0
    %374 = vmatprep.subr.mxu0 0.0
    %375 = vmatpush1.msra.mxu0 0.0
    %376 = vmatprep.subr.mxu0 0.0
    %377 = vmatpush1.msra.mxu0 0.0
    %378 = vmatprep.subr.mxu0 0.0
    %379 = vmatpush1.msra.mxu0 0.0
    %380 = vmatprep.subr.mxu0 0.0
    %381 = vmatpush1.msra.mxu0 0.0
    %382 = vmatprep.subr.mxu0 0.0
    %383 = vmatpush1.msra.mxu0 0.0
    %384 = vmatprep.subr.mxu0 0.0
    %385 = vmatpush1.msra.mxu0 0.0
    %386 = vmatprep.subr.mxu0 0.0
    %387 = vmatpush1.msra.mxu0 0.0
    %388 = vmatprep.subr.mxu0 0.0
    %389 = vmatpush1.msra.mxu0 0.0
    %390 = vmatprep.subr.mxu0 0.0
    %391 = vmatpush1.msra.mxu0 0.0
    %392 = vmatprep.subr.mxu0 0.0
    %393 = vmatpush1.msra.mxu0 0.0
    %394 = vmatprep.subr.mxu0 0.0
    %395 = vmatpush1.msra.mxu0 0.0
    %396 = vmatprep.subr.mxu0 0.0
    %397 = vmatpush1.msra.mxu0 0.0
    %398 = vmatprep.subr.mxu0 0.0
    %399 = vmatpush1.msra.mxu0 0.0
    %400 = vmatprep.subr.mxu0 0.0
    %401 = vmatpush1.msra.mxu0 0.0
    %402 = vmatprep.subr.mxu0 0.0
    %403 = vmatpush1.msra.mxu0 0.0
    %404 = vmatprep.subr.mxu0 0.0
    %405 = vmatpush1.msra.mxu0 0.0
    %406 = vmatprep.subr.mxu0 0.0
    %407 = vmatpush1.msra.mxu0 0.0
    %408 = vmatprep.subr.mxu0 0.0
    %409 = vmatpush1.msra.mxu0 0.0
    %410 = vmatprep.mubr.f32.mxu0 0.0
    %411 = vmatmul.mubr.f32.gmra.mrb[0].mxu0 %v344
    %v412 = vpop.f32.mrb[0].mxu0
    %v413 = vadd.f32 %v341, %v412
    %v414 = vpop.f32.mrb[0].mxu0
    %415 = vdwg.mxu0
    %v416 = vmax.f32 %v413, 0.0
    %v417 = vadd.f32 %v331, %v416
    %s418 = scalar_lea.vmem [#allocation7], 48
    %v419 = vld [vmem:[%s418] sm:$0xff]
    %v420 = vld [vmem:[%s418 + $0x8] sm:$0xff]
    %s421 = scalar_lea.vmem [#allocation8], 3
    %v422 = vld [vmem:[%s421] sm:$0x1]
    %v424 = vlaneseq
    %v425 = vshrl.u32 %v424, 7
    %v426 = vsub.s32 0, %v425
    %v427 = vrot.slane %v422, %v426
    %v430 = vsel %vm87, %v417, 0
    %432 = vmatprep.subr.mxu0 0.0
    %433 = vmatpush1.msra.mxu0 %v419
    %434 = vmatprep.subr.mxu0 0.0
    %435 = vmatpush1.msra.mxu0 %v420
    %436 = vmatprep.subr.mxu0 0.0
    %437 = vmatpush1.msra.mxu0 0.0
    %438 = vmatprep.subr.mxu0 0.0
    %439 = vmatpush1.msra.mxu0 0.0
    %440 = vmatprep.subr.mxu0 0.0
    %441 = vmatpush1.msra.mxu0 0.0
    %442 = vmatprep.subr.mxu0 0.0
    %443 = vmatpush1.msra.mxu0 0.0
    %444 = vmatprep.subr.mxu0 0.0
    %445 = vmatpush1.msra.mxu0 0.0
    %446 = vmatprep.subr.mxu0 0.0
    %447 = vmatpush1.msra.mxu0 0.0
    %448 = vmatprep.subr.mxu0 0.0
    %449 = vmatpush1.msra.mxu0 0.0
    %450 = vmatprep.subr.mxu0 0.0
    %451 = vmatpush1.msra.mxu0 0.0
    %452 = vmatprep.subr.mxu0 0.0
    %453 = vmatpush1.msra.mxu0 0.0
    %454 = vmatprep.subr.mxu0 0.0
    %455 = vmatpush1.msra.mxu0 0.0
    %456 = vmatprep.subr.mxu0 0.0
    %457 = vmatpush1.msra.mxu0 0.0
    %458 = vmatprep.subr.mxu0 0.0
    %459 = vmatpush1.msra.mxu0 0.0
    %460 = vmatprep.subr.mxu0 0.0
    %461 = vmatpush1.msra.mxu0 0.0
    %462 = vmatprep.subr.mxu0 0.0
    %463 = vmatpush1.msra.mxu0 0.0
    %464 = vmatprep.subr.mxu0 0.0
    %465 = vmatpush1.msra.mxu0 0.0
    %466 = vmatprep.subr.mxu0 0.0
    %467 = vmatpush1.msra.mxu0 0.0
    %468 = vmatprep.subr.mxu0 0.0
    %469 = vmatpush1.msra.mxu0 0.0
    %470 = vmatprep.subr.mxu0 0.0
    %471 = vmatpush1.msra.mxu0 0.0
    %472 = vmatprep.subr.mxu0 0.0
    %473 = vmatpush1.msra.mxu0 0.0
    %474 = vmatprep.subr.mxu0 0.0
    %475 = vmatpush1.msra.mxu0 0.0
    %476 = vmatprep.subr.mxu0 0.0
    %477 = vmatpush1.msra.mxu0 0.0
    %478 = vmatprep.subr.mxu0 0.0
    %479 = vmatpush1.msra.mxu0 0.0
    %480 = vmatprep.subr.mxu0 0.0
    %481 = vmatpush1.msra.mxu0 0.0
    %482 = vmatprep.subr.mxu0 0.0
    %483 = vmatpush1.msra.mxu0 0.0
    %484 = vmatprep.subr.mxu0 0.0
    %485 = vmatpush1.msra.mxu0 0.0
    %486 = vmatprep.subr.mxu0 0.0
    %487 = vmatpush1.msra.mxu0 0.0
    %488 = vmatprep.subr.mxu0 0.0
    %489 = vmatpush1.msra.mxu0 0.0
    %490 = vmatprep.subr.mxu0 0.0
    %491 = vmatpush1.msra.mxu0 0.0
    %492 = vmatprep.subr.mxu0 0.0
    %493 = vmatpush1.msra.mxu0 0.0
    %494 = vmatprep.subr.mxu0 0.0
    %495 = vmatpush1.msra.mxu0 0.0
    %496 = vmatprep.mubr.f32.mxu0 0.0
    %497 = vmatmul.mubr.f32.gmra.mrb[0].mxu0 %v430
    %v498 = vpop.f32.mrb[0].mxu0
    %v499 = vadd.f32 %v427, %v498
    %v500 = vpop.f32.mrb[0].mxu0
    %501 = vdwg.mxu0
    %v502 = vmax.f32 %v499, 0.0
    %v503 = vadd.f32 %v417, %v502
    %s504 = scalar_lea.vmem [#allocation7], 64
    %v505 = vld [vmem:[%s504] sm:$0xff]
    %v506 = vld [vmem:[%s504 + $0x8] sm:$0xff]
    %s507 = scalar_lea.vmem [#allocation8], 4
    %v508 = vld [vmem:[%s507] sm:$0x1]
    %v510 = vlaneseq
    %v511 = vshrl.u32 %v510, 7
    %v512 = vsub.s32 0, %v511
    %v513 = vrot.slane %v508, %v512
    %v516 = vsel %vm87, %v503, 0
    %518 = vmatprep.subr.mxu0 0.0
    %519 = vmatpush1.msra.mxu0 %v505
    %520 = vmatprep.subr.mxu0 0.0
    %521 = vmatpush1.msra.mxu0 %v506
    %522 = vmatprep.subr.mxu0 0.0
    %523 = vmatpush1.msra.mxu0 0.0
    %524 = vmatprep.subr.mxu0 0.0
    %525 = vmatpush1.msra.mxu0 0.0
    %526 = vmatprep.subr.mxu0 0.0
    %527 = vmatpush1.msra.mxu0 0.0
    %528 = vmatprep.subr.mxu0 0.0
    %529 = vmatpush1.msra.mxu0 0.0
    %530 = vmatprep.subr.mxu0 0.0
    %531 = vmatpush1.msra.mxu0 0.0
    %532 = vmatprep.subr.mxu0 0.0
    %533 = vmatpush1.msra.mxu0 0.0
    %534 = vmatprep.subr.mxu0 0.0
    %535 = vmatpush1.msra.mxu0 0.0
    %536 = vmatprep.subr.mxu0 0.0
    %537 = vmatpush1.msra.mxu0 0.0
    %538 = vmatprep.subr.mxu0 0.0
    %539 = vmatpush1.msra.mxu0 0.0
    %540 = vmatprep.subr.mxu0 0.0
    %541 = vmatpush1.msra.mxu0 0.0
    %542 = vmatprep.subr.mxu0 0.0
    %543 = vmatpush1.msra.mxu0 0.0
    %544 = vmatprep.subr.mxu0 0.0
    %545 = vmatpush1.msra.mxu0 0.0
    %546 = vmatprep.subr.mxu0 0.0
    %547 = vmatpush1.msra.mxu0 0.0
    %548 = vmatprep.subr.mxu0 0.0
    %549 = vmatpush1.msra.mxu0 0.0
    %550 = vmatprep.subr.mxu0 0.0
    %551 = vmatpush1.msra.mxu0 0.0
    %552 = vmatprep.subr.mxu0 0.0
    %553 = vmatpush1.msra.mxu0 0.0
    %554 = vmatprep.subr.mxu0 0.0
    %555 = vmatpush1.msra.mxu0 0.0
    %556 = vmatprep.subr.mxu0 0.0
    %557 = vmatpush1.msra.mxu0 0.0
    %558 = vmatprep.subr.mxu0 0.0
    %559 = vmatpush1.msra.mxu0 0.0
    %560 = vmatprep.subr.mxu0 0.0
    %561 = vmatpush1.msra.mxu0 0.0
    %562 = vmatprep.subr.mxu0 0.0
    %563 = vmatpush1.msra.mxu0 0.0
    %564 = vmatprep.subr.mxu0 0.0
    %565 = vmatpush1.msra.mxu0 0.0
    %566 = vmatprep.subr.mxu0 0.0
    %567 = vmatpush1.msra.mxu0 0.0
    %568 = vmatprep.subr.mxu0 0.0
    %569 = vmatpush1.msra.mxu0 0.0
    %570 = vmatprep.subr.mxu0 0.0
    %571 = vmatpush1.msra.mxu0 0.0
    %572 = vmatprep.subr.mxu0 0.0
    %573 = vmatpush1.msra.mxu0 0.0
    %574 = vmatprep.subr.mxu0 0.0
    %575 = vmatpush1.msra.mxu0 0.0
    %576 = vmatprep.subr.mxu0 0.0
    %577 = vmatpush1.msra.mxu0 0.0
    %578 = vmatprep.subr.mxu0 0.0
    %579 = vmatpush1.msra.mxu0 0.0
    %580 = vmatprep.subr.mxu0 0.0
    %581 = vmatpush1.msra.mxu0 0.0
    %582 = vmatprep.mubr.f32.mxu0 0.0
    %583 = vmatmul.mubr.f32.gmra.mrb[0].mxu0 %v516
    %v584 = vpop.f32.mrb[0].mxu0
    %v585 = vadd.f32 %v513, %v584
    %v586 = vpop.f32.mrb[0].mxu0
    %587 = vdwg.mxu0
    %v588 = vmax.f32 %v585, 0.0
    %v589 = vadd.f32 %v503, %v588
    %v590 = vld [vmem:[%s5] sm:$0xff]
    %v591 = vld [vmem:[%s5 + $0x8] sm:$0xff]
    %v593 = vsel %vm87, %v589, 0
    %595 = vmatprep.subr.mxu0 0.0
    %596 = vmatpush1.msra.mxu0 %v590
    %597 = vmatprep.subr.mxu0 0.0
    %598 = vmatpush1.msra.mxu0 %v591
    %599 = vmatprep.subr.mxu0 0.0
    %600 = vmatpush1.msra.mxu0 0.0
    %601 = vmatprep.subr.mxu0 0.0
    %602 = vmatpush1.msra.mxu0 0.0
    %603 = vmatprep.subr.mxu0 0.0
    %604 = vmatpush1.msra.mxu0 0.0
    %605 = vmatprep.subr.mxu0 0.0
    %606 = vmatpush1.msra.mxu0 0.0
    %607 = vmatprep.subr.mxu0 0.0
    %608 = vmatpush1.msra.mxu0 0.0
    %609 = vmatprep.subr.mxu0 0.0
    %610 = vmatpush1.msra.mxu0 0.0
    %611 = vmatprep.subr.mxu0 0.0
    %612 = vmatpush1.msra.mxu0 0.0
    %613 = vmatprep.subr.mxu0 0.0
    %614 = vmatpush1.msra.mxu0 0.0
    %615 = vmatprep.subr.mxu0 0.0
    %616 = vmatpush1.msra.mxu0 0.0
    %617 = vmatprep.subr.mxu0 0.0
    %618 = vmatpush1.msra.mxu0 0.0
    %619 = vmatprep.subr.mxu0 0.0
    %620 = vmatpush1.msra.mxu0 0.0
    %621 = vmatprep.subr.mxu0 0.0
    %622 = vmatpush1.msra.mxu0 0.0
    %623 = vmatprep.subr.mxu0 0.0
    %624 = vmatpush1.msra.mxu0 0.0
    %625 = vmatprep.subr.mxu0 0.0
    %626 = vmatpush1.msra.mxu0 0.0
    %627 = vmatprep.subr.mxu0 0.0
    %628 = vmatpush1.msra.mxu0 0.0
    %629 = vmatprep.subr.mxu0 0.0
    %630 = vmatpush1.msra.mxu0 0.0
    %631 = vmatprep.subr.mxu0 0.0
    %632 = vmatpush1.msra.mxu0 0.0
    %633 = vmatprep.subr.mxu0 0.0
    %634 = vmatpush1.msra.mxu0 0.0
    %635 = vmatprep.subr.mxu0 0.0
    %636 = vmatpush1.msra.mxu0 0.0
    %637 = vmatprep.subr.mxu0 0.0
    %638 = vmatpush1.msra.mxu0 0.0
    %639 = vmatprep.subr.mxu0 0.0
    %640 = vmatpush1.msra.mxu0 0.0
    %641 = vmatprep.subr.mxu0 0.0
    %642 = vmatpush1.msra.mxu0 0.0
    %643 = vmatprep.subr.mxu0 0.0
    %644 = vmatpush1.msra.mxu0 0.0
    %645 = vmatprep.subr.mxu0 0.0
    %646 = vmatpush1.msra.mxu0 0.0
    %647 = vmatprep.subr.mxu0 0.0
    %648 = vmatpush1.msra.mxu0 0.0
    %649 = vmatprep.subr.mxu0 0.0
    %650 = vmatpush1.msra.mxu0 0.0
    %651 = vmatprep.subr.mxu0 0.0
    %652 = vmatpush1.msra.mxu0 0.0
    %653 = vmatprep.subr.mxu0 0.0
    %654 = vmatpush1.msra.mxu0 0.0
    %655 = vmatprep.subr.mxu0 0.0
    %656 = vmatpush1.msra.mxu0 0.0
    %657 = vmatprep.subr.mxu0 0.0
    %658 = vmatpush1.msra.mxu0 0.0
    %659 = vmatprep.mubr.f32.mxu0 0.0
    %660 = vmatmul.mubr.f32.gmra.mrb[0].mxu0 %v593
    %v661 = vpop.f32.mrb[0].mxu0
    %v662 = vadd.f32 0.0, %v661
    %v663 = vpop.f32.mrb[0].mxu0
    %664 = vdwg.mxu0
    %vm665 = vcmask 320512
    %666 = vst.msk [vmem:[#allocation10] sm:$0x3] %vm665, %v662
    // Predicated region
    $region42: #{tpu_custom_call.1} parent=1 // pred_check
      _
    $region43: #{tpu_custom_call.1} parent=1 // pred_check_branch
      %668 = sbr.rel (0) target = $region45
    $region44: #{tpu_custom_call.1} parent=1 // pred_region
      %s670 = ssub.s32 32, 32
      %671 = vsyncadd [#allocation4], %s670
      %s673 = sshll.u32 [#allocation10], 4
      %s674 = int_to_ptr.vmem [resolvable:$true] %s673
      %676 = dma.vmem_to_hbm [thread:$0]  %s674, 32, %s6, [#allocation4]
    $region45: #{tpu_custom_call.1} parent=1 // pred_fallthru
      _
    // Predicated region
    $region46: #{tpu_custom_call.1} parent=1 // pred_check
      _
    $region47: #{tpu_custom_call.1} parent=1 // pred_check_branch
      %678 = sbr.rel (0) target = $region49
    $region48: #{tpu_custom_call.1} parent=1 // pred_region
      %679 = dma.done [#allocation4], 32
    $region49: #{tpu_custom_call.1} parent=1 // pred_fallthru
      _
    %680 = vsyncpa [#allocation3], 1
    %681 = vsyncpa [#allocation6], 1
    %682 = vsyncpa [#allocation9], 1
    %683 = vsyncpa [#allocation4], 1

</llo_original>
